<compile_context>
chip_gen: v5e
topology: v5e:2x2
jax: 0.10.0
libtpu: 0.0.40
codegen_flags: <defaults>
</compile_context>

<pallas_src>
import jax
import jax.numpy as jnp
from jax import lax
from jax.experimental import pallas as pl
from jax.experimental.pallas import tpu as pltpu

_LANES = 128
_SMEM = pl.BlockSpec(memory_space=pltpu.MemorySpace.SMEM)
_VMEM = pl.BlockSpec(memory_space=pltpu.MemorySpace.VMEM)


def _logreg_kernel(wh_ref, bh_ref, x_ref, o_ref):
    # wh_ref / bh_ref: (1,) f32 SMEM scalars holding 0.5*w and 0.5*b.
    # x_ref / o_ref:   (block_rows, 128) f32 VMEM tiles.
    # sigmoid(x*w + b) = 0.5 * tanh(0.5*(x*w + b)) + 0.5
    #                  = 0.5 * tanh(x*(0.5*w) + 0.5*b) + 0.5
    z_half = x_ref[...] * wh_ref[0] + bh_ref[0]
    o_ref[...] = 0.5 * jnp.tanh(z_half) + 0.5


def _forward_slab(x2d, w_half, b_half, *, block_rows, nogrid_rows):
    """Run the kernel over a lane-dense (rows, 128) f32 slab -> (rows, 128)."""
    rows = x2d.shape[0]
    out_shape = jax.ShapeDtypeStruct((rows, _LANES), jnp.float32)

    if rows <= nogrid_rows:
        # Small slab (<= ~512 KiB): single un-gridded call, no pipeline overhead.
        return pl.pallas_call(
            _logreg_kernel,
            out_shape=out_shape,
            in_specs=[_SMEM, _SMEM, _VMEM],
            out_specs=_VMEM,
        )(w_half, b_half, x2d)

    # Streamed path: lane-dense (eff_rows, 128) tiles, "parallel" grid axis so
    # megacore / multi-TC chips can shard it.  Cap the block so there are at
    # least 2 grid blocks (keeps both v7x TensorCores busy); 4096 rows = 2 MiB
    # per f32 tile, so double-buffered in+out = 8 MiB, safe on v5e/v6e/v7x.
    eff_rows = min(block_rows, 8 * pl.cdiv(pl.cdiv(rows, 2), 8))
    grid = (pl.cdiv(rows, eff_rows),)  # ragged last block is fine (elementwise)
    return pl.pallas_call(
        _logreg_kernel,
        out_shape=out_shape,
        grid=grid,
        in_specs=[
            _SMEM,
            _SMEM,
            pl.BlockSpec((eff_rows, _LANES), lambda i: (i, 0)),
        ],
        out_specs=pl.BlockSpec((eff_rows, _LANES), lambda i: (i, 0)),
        compiler_params=pltpu.CompilerParams(
            dimension_semantics=("parallel",)),
    )(w_half, b_half, x2d)


def logistic_regression(x, weight, bias, *, block_rows=4096, nogrid_rows=1024):
    """Forward of torch.nn.Linear(1,1) + sigmoid.

    x: (N, 1) or (N,) f32; weight: (1, 1) f32; bias: (1,) f32 -> (N, 1) f32.
    """
    xf = jnp.asarray(x, jnp.float32).reshape(-1)
    n = xf.shape[0]
    w = jnp.asarray(weight, jnp.float32).reshape(())
    b = jnp.asarray(bias, jnp.float32).reshape(())
    w_half = (0.5 * w).reshape(1)
    b_half = (0.5 * b).reshape(1)

    rows_main = n // _LANES
    tail = n - rows_main * _LANES

    pieces = []
    if rows_main > 0:
        # If N is a multiple of 128 this is a free reshape (no pad, no copy).
        x_main = xf if tail == 0 else lax.slice(xf, (0,), (rows_main * _LANES,))
        out_main = _forward_slab(
            x_main.reshape(rows_main, _LANES), w_half, b_half,
            block_rows=block_rows, nogrid_rows=nogrid_rows)
        pieces.append(out_main.reshape(-1))
    if tail > 0:
        # Lane tail: pad only these <=127 elements to one lane-dense row.
        x_tail = lax.slice(xf, (rows_main * _LANES,), (n,))
        x_tail = jnp.pad(x_tail, (0, _LANES - tail)).reshape(1, _LANES)
        out_tail = _forward_slab(x_tail, w_half, b_half,
                                 block_rows=block_rows, nogrid_rows=nogrid_rows)
        pieces.append(out_tail.reshape(-1)[:tail])

    out = pieces[0] if len(pieces) == 1 else jnp.concatenate(pieces)
    return out.reshape(n, 1)


if __name__ == "__main__":
    key = jax.random.PRNGKey(0)
    kw, kb = jax.random.split(key)

    # Deterministic parameter init mimicking torch.nn.Linear(1, 1):
    # U(-1/sqrt(fan_in), 1/sqrt(fan_in)) with fan_in = 1.
    weight = jax.random.uniform(kw, (1, 1), jnp.float32, minval=-1.0, maxval=1.0)
    bias = jax.random.uniform(kb, (1,), jnp.float32, minval=-1.0, maxval=1.0)

    def ref_fn(xx):
        return jax.nn.sigmoid(xx @ weight.T + bias)

    # 1) Spec shape: x = np.linspace(0, 10, 200) -> (200, 1).  Exercises the
    #    un-gridded main slab + tail path.
    n = 200
    x = jnp.linspace(0.0, 10.0, n, dtype=jnp.float32).reshape(n, 1)
    out = logistic_regression(x, weight, bias)
    jax.block_until_ready(out)
    assert out.shape == (n, 1)
    assert jnp.allclose(out, ref_fn(x), atol=1e-5, rtol=1e-5)

    # 2) Multiple-of-128 N (zero-copy path) through the pipelined grid
    #    (>= 2 blocks, ragged-free).
    n2 = 2048 * _LANES
    x2 = jnp.linspace(-6.0, 6.0, n2, dtype=jnp.float32).reshape(n2, 1)
    out2 = logistic_regression(x2, weight, bias)
    jax.block_until_ready(out2)
    assert out2.shape == (n2, 1)
    assert jnp.allclose(out2, ref_fn(x2), atol=1e-5, rtol=1e-5)

    # 3) Ragged case: gridded main slab with a partial final block + lane tail.
    n3 = 1300 * _LANES + 57
    x3 = jnp.linspace(-4.0, 4.0, n3, dtype=jnp.float32).reshape(n3, 1)
    out3 = logistic_regression(x3, weight, bias)
    jax.block_until_ready(out3)
    assert out3.shape == (n3, 1)
    assert jnp.allclose(out3, ref_fn(x3), atol=1e-5, rtol=1e-5)

    print("KERNEL_OK")
</pallas_src>

<mosaic_0001>
module attributes {stable_mosaic.version = 11 : i64} {
  func.func @_logreg_kernel(%arg0: memref<1xf32, #tpu.memory_space<smem>>, %arg1: memref<1xf32, #tpu.memory_space<smem>>, %arg2: memref<1x128xf32, #tpu.memory_space<vmem>>, %arg3: memref<1x128xf32, #tpu.memory_space<vmem>>) attributes {dimension_semantics = [], scalar_prefetch = 0 : i64, scratch_operands = 0 : i64, tpu.core_type = #tpu.core_type<tc>} {
    %c0 = arith.constant 0 : index
    %c0_0 = arith.constant 0 : index
    %0 = vector.load %arg2[%c0, %c0_0] : memref<1x128xf32, #tpu.memory_space<vmem>>, vector<1x128xf32>
    %c0_1 = arith.constant 0 : index
    %1 = memref.load %arg0[%c0_1] : memref<1xf32, #tpu.memory_space<smem>>
    %2 = vector.broadcast %1 : f32 to vector<1x128xf32>
    %3 = arith.mulf %0, %2 : vector<1x128xf32>
    %c0_2 = arith.constant 0 : index
    %4 = memref.load %arg1[%c0_2] : memref<1xf32, #tpu.memory_space<smem>>
    %5 = vector.broadcast %4 : f32 to vector<1x128xf32>
    %6 = arith.addf %3, %5 : vector<1x128xf32>
    %7 = math.tanh %6 : vector<1x128xf32>
    %cst = arith.constant 5.000000e-01 : f32
    %8 = vector.broadcast %cst : f32 to vector<1x128xf32>
    %9 = arith.mulf %8, %7 : vector<1x128xf32>
    %cst_3 = arith.constant 5.000000e-01 : f32
    %10 = vector.broadcast %cst_3 : f32 to vector<1x128xf32>
    %11 = arith.addf %9, %10 : vector<1x128xf32>
    %c0_4 = arith.constant 0 : index
    %c0_5 = arith.constant 0 : index
    %12 = vector.load %arg3[%c0_4, %c0_5] : memref<1x128xf32, #tpu.memory_space<vmem>>, vector<1x128xf32>
    tpu.vector_store %arg3[%c0_4, %c0_5], %11 {strides = array<i32>} : memref<1x128xf32, #tpu.memory_space<vmem>>, vector<1x128xf32>,
    return
  }
}

</mosaic_0001>

<llo_original>
// kernel: tpu_custom_call.1
$region0: #{tpu_custom_call.1}
  #allocation0 [shape = 'u32[]', space=smem, size = 0x4, offset = 0x4, fixed_abs, tag = 'smem constant byte address 0x4 - core index']
  #allocation1 [shape = 'u32[72,128]{1,0:T(1,128)}', space=vmem, size = 0x9000, scoped, tag = 'internal scratch']
  #allocation2 [shape = 'f32[1]{0:T(128)S(6)}', space=smem, size = 0x200, scoped, tag = 'scoped memory for tpu_custom_call.1']
  #allocation3 [shape = 'f32[1]{0:T(128)S(6)}', space=smem, size = 0x200, scoped, tag = 'scoped memory for tpu_custom_call.1']
  %s0 = inlined_call_operand.<no memory space> [shape: f32[1], index: 0, kind: input, shape index: {}]
  %s1 = inlined_call_operand.<no memory space> [shape: f32[1], index: 1, kind: input, shape index: {}]
  %s2 = inlined_call_operand.vmem [shape: f32[1,128], index: 2, kind: input, shape index: {}]
  %s3 = inlined_call_operand.hbm [shape: f32[1,128], index: 3, kind: output, shape index: {}]
  %s4 = sld [smem:[#allocation0]]
  $region22: #{tpu_custom_call.1} parent=0
    _
  %s6 = ssub.s32 1, %s4
  %s7 = scalar_select 0, %s6, %s4
  %8 = sst [smem:[#allocation2]] %s0
  %9 = sst [smem:[#allocation3]] %s1
  $region1: #{tpu_custom_call.1} parent=0
    #allocation4 [shape = 'u8[512]{0}', space=vmem, size = 0x400, scoped, tag = 'output window, operand 0, single buffered']
    #allocation5 [shape = 's32[1]{0}', space=sflag, size = 0x4, scoped, tag = 'scoped memory for tpu_custom_call.1']
    %10 = vsyncpa [#allocation5], 0
    // Predicated region
    $region2: #{tpu_custom_call.1} parent=1 // pred_check
      _
    $region3: #{tpu_custom_call.1} parent=1 // pred_check_branch
      %12 = sbr.rel (0) target = $region5
    $region4: #{tpu_custom_call.1} parent=1 // pred_region
      _
    $region5: #{tpu_custom_call.1} parent=1 // pred_fallthru
      _
    // Predicated region
    $region6: #{tpu_custom_call.1} parent=1 // pred_check
      _
    $region7: #{tpu_custom_call.1} parent=1 // pred_check_branch
      %14 = sbr.rel (0) target = $region9
    $region8: #{tpu_custom_call.1} parent=1 // pred_region
      _
    $region9: #{tpu_custom_call.1} parent=1 // pred_fallthru
      _
    // Predicated region
    $region10: #{tpu_custom_call.1} parent=1 // pred_check
      _
    $region11: #{tpu_custom_call.1} parent=1 // pred_check_branch
      %16 = sbr.rel (0) target = $region13
    $region12: #{tpu_custom_call.1} parent=1 // pred_region
      _
    $region13: #{tpu_custom_call.1} parent=1 // pred_fallthru
      _
    %v17 = vld [vmem:[%s2] sm:$0x1]
    %s18 = sld [smem:[#allocation2]]
    %v19 = vstv %s18
    %v20 = vmul.f32 %v17, %v19
    %s21 = sld [smem:[#allocation3]]
    %v22 = vstv %s21
    %v23 = vadd.f32 %v20, %v22
    %v24 = vtanh.pop %v23
    %v25 = vmul.f32 %v24, 0.5
    %v26 = vadd.f32 %v25, 0.5
    %27 = vst [vmem:[#allocation4] sm:$0x1] %v26
    // Predicated region
    $region14: #{tpu_custom_call.1} parent=1 // pred_check
      _
    $region15: #{tpu_custom_call.1} parent=1 // pred_check_branch
      %29 = sbr.rel (0) target = $region17
    $region16: #{tpu_custom_call.1} parent=1 // pred_region
      %31 = vsyncadd [#allocation5], 0
      %s33 = sshll.u32 [#allocation4], 4
      %s34 = int_to_ptr.vmem [resolvable:$true] %s33
      %s35 = sshll.u32 %s3, 4
      %s36 = int_to_ptr.hbm [resolvable:$true] %s35
      %38 = dma.vmem_to_hbm [thread:$0]  %s34, 16, %s36, [#allocation5]
    $region17: #{tpu_custom_call.1} parent=1 // pred_fallthru
      _
    // Predicated region
    $region18: #{tpu_custom_call.1} parent=1 // pred_check
      _
    $region19: #{tpu_custom_call.1} parent=1 // pred_check_branch
      %40 = sbr.rel (0) target = $region21
    $region20: #{tpu_custom_call.1} parent=1 // pred_region
      %42 = dma.done [#allocation5], 16
    $region21: #{tpu_custom_call.1} parent=1 // pred_fallthru
      _
    %43 = vsyncpa [#allocation5], 1

</llo_original>
